<compile_context>
chip_gen: v7x
topology: tpu7x:2x2x1
jax: 0.10.0
libtpu: 0.0.40
codegen_flags: <defaults>
</compile_context>

<pallas_src>
import functools

import jax
import jax.numpy as jnp
from jax import lax
from jax.experimental import pallas as pl
from jax.experimental.pallas import tpu as pltpu


def _sampler_kernel(mask_ref, union_ref, region_ref, stats_ref, *, expand_ratio):
    # mask_ref   : (1, V, U) int8 {0,1}  current mask (per-grid-step block)
    # union_ref  : (V, U)    int8 {0,1}  any-mask union (precomputed once in wrapper)
    # region_ref : (1, V, U) int8        1=fg, 2=bg(in crop), +4 if on another mask
    # stats_ref  : (1, 8, 128) f32       rows = [u0, v0, u1, v1, cnt_fg, cnt_bg, vc, uc]
    _, V, U = mask_ref.shape
    Vf, Uf = float(V), float(U)

    mf = mask_ref[0].astype(jnp.float32)          # (V, U) 0/1
    uf = union_ref[...].astype(jnp.float32)       # (V, U) 0/1, mask subset of union

    iota_v = lax.broadcasted_iota(jnp.int32, (V, 1), 0).astype(jnp.float32)   # (V,1)
    iota_u = lax.broadcasted_iota(jnp.int32, (1, U), 1).astype(jnp.float32)   # (1,U)

    # bbox from row/column projections (tiny min/max instead of full-plane wheres).
    row_any = jnp.max(mf, axis=1, keepdims=True)   # (V,1)
    col_any = jnp.max(mf, axis=0, keepdims=True)   # (1,U)
    big = jnp.float32(1e9)
    v0 = jnp.min(jnp.where(row_any > 0.0, iota_v, big))
    v1 = jnp.max(jnp.where(row_any > 0.0, iota_v, -big))
    u0 = jnp.min(jnp.where(col_any > 0.0, iota_u, big))
    u1 = jnp.max(jnp.where(col_any > 0.0, iota_u, -big))
    # NOTE: for an empty mask these stay at the +-1e9 sentinels (finite but
    # meaningless); the torch reference crashes in that case instead.

    # find_expanded_coords called with (lo, hi + 1); ends exclusive, upper end
    # clamped to dim-1 (faithful to the torch module incl. last row/col exclusion).
    vlen = (v1 + 1.0) - v0
    ulen = (u1 + 1.0) - u0
    dv = jnp.floor(jnp.float32(expand_ratio) * vlen)
    du = jnp.floor(jnp.float32(expand_ratio) * ulen)
    v0e = jnp.maximum(0.0, v0 - dv)
    v1e = jnp.minimum(v1 + 1.0 + dv, Vf - 1.0)
    u0e = jnp.maximum(0.0, u0 - du)
    u1e = jnp.minimum(u1 + 1.0 + du, Uf - 1.0)

    # crop indicator as an outer product of tiny row/col indicators.
    row_in = ((iota_v >= v0e) & (iota_v < v1e)).astype(jnp.float32)   # (V,1)
    col_in = ((iota_u >= u0e) & (iota_u < u1e)).astype(jnp.float32)   # (1,U)
    in_crop = row_in * col_in                                         # (V,U)
    fg = mf * in_crop                                                 # (V,U)

    # fg count / centroid from per-row and per-column projections.
    row_fg = jnp.sum(fg, axis=1, keepdims=True)    # (V,1)
    col_fg = jnp.sum(fg, axis=0, keepdims=True)    # (1,U)
    cnt_fg = jnp.sum(row_fg)
    # crop is an integer rectangle -> bg count is analytic (clamped for the
    # degenerate empty-mask case, where it correctly becomes 0).
    crop_cnt = jnp.maximum(v1e - v0e, 0.0) * jnp.maximum(u1e - u0e, 0.0)
    cnt_bg = jnp.maximum(crop_cnt - cnt_fg, 0.0)
    denom = jnp.maximum(cnt_fg, 1.0)               # avoid NaN for empty masks
    # Global-coordinate centroid; the crop origin cancels in the offsets.
    vc = jnp.sum(row_fg * iota_v) / denom
    uc = jnp.sum(col_fg * iota_u) / denom

    # region plane: fg=1, bg=2 (non-mask pixel inside crop), +4 if on another mask.
    other = uf - mf                                # 0/1 (mask subset of union)
    region_f = 2.0 * in_crop - fg + 4.0 * other    # values in {0,1,2,4,6}
    region_ref[0] = region_f.astype(jnp.int32).astype(jnp.int8)

    # Single unmasked (8,128) store of all per-mask scalars.
    row_id = lax.broadcasted_iota(jnp.int32, (8, 128), 0)
    stats = jnp.where(row_id == 0, u0,
            jnp.where(row_id == 1, v0,
            jnp.where(row_id == 2, u1,
            jnp.where(row_id == 3, v1,
            jnp.where(row_id == 4, cnt_fg,
            jnp.where(row_id == 5, cnt_bg,
            jnp.where(row_id == 6, vc, uc)))))))
    stats_ref[0] = stats
    # TODO(synk): optionally move stats to an (n, 8) SMEM-space output to drop the
    # remaining 4 KiB/mask of HBM writeback.


def point_cloud_sampler_forward(image_hwc, masks, cat_emb, *, bg_num, fg_num,
                                expand_ratio=0.2, offset_max=128.0, key):
    """Equivalent of PointCloudSampler.forward(image, masks) -> (points, xyxys)."""
    n, V, U = masks.shape
    P = V * U
    masks_i8 = masks.astype(jnp.int8)                      # 1 B/px kernel input
    union_i8 = jnp.any(masks, axis=0).astype(jnp.int8)     # computed once, not per mask
    cat_emb = cat_emb.astype(jnp.float32)
    assert cat_emb.shape[0] >= 3 and cat_emb.shape[1] == 3

    kernel = functools.partial(_sampler_kernel, expand_ratio=float(expand_ratio))

    # VMEM budget: double-buffered int8 blocks (mask, union, region) + stats, plus
    # headroom for the handful of live f32 full-plane temporaries in the body;
    # clamped per-generation from the queried VMEM capacity (64 MiB on v7x).
    plane = V * U
    block_bytes = 2 * plane + 2 * plane + 2 * plane + 2 * 8 * 128 * 4
    temp_bytes = 6 * plane * 4
    want = int((block_bytes + temp_bytes) * 1.25)
    try:
        cap = int(pltpu.get_tpu_info().vmem_capacity_bytes * 0.85)
    except Exception:
        cap = 54 * 2 ** 20
    vmem_limit = min(max(want, 16 * 2 ** 20), cap)
    # TODO(synk): for images much larger than ~1-2 MP add a V-tiled two-pass
    # variant (pass 1: bbox/counts/centroid; pass 2: per-tile region writes) so the
    # per-step footprint stays under v7x's 64 MiB VMEM.

    region, stats = pl.pallas_call(
        kernel,
        grid=(n,),
        in_specs=[
            pl.BlockSpec((1, V, U), lambda i: (i, 0, 0)),   # current mask only
            pl.BlockSpec((V, U), lambda i: (0, 0)),         # union plane, resident
        ],
        out_specs=[
            pl.BlockSpec((1, V, U), lambda i: (i, 0, 0)),
            pl.BlockSpec((1, 8, 128), lambda i: (i, 0, 0)),
        ],
        out_shape=[
            jax.ShapeDtypeStruct((n, V, U), jnp.int8),
            jax.ShapeDtypeStruct((n, 8, 128), jnp.float32),
        ],
        compiler_params=pltpu.CompilerParams(
            dimension_semantics=("parallel",),   # masks independent -> megacore on v7x
            vmem_limit_bytes=vmem_limit),
    )(masks_i8, union_i8)

    u0 = stats[:, 0, 0]
    v0 = stats[:, 1, 0]
    u1 = stats[:, 2, 0]
    v1 = stats[:, 3, 0]
    cnt_fg = stats[:, 4, 0]
    cnt_bg = stats[:, 5, 0]
    vc = stats[:, 6, 0]
    uc = stats[:, 7, 0]
    xyxys = jnp.stack([u0 / U, v0 / V, u1 / U, v1 / V], axis=1).astype(jnp.float32)

    region_flat = region.reshape(n, P)
    fg_valid = region_flat == 1
    bg_valid = (region_flat & 2) != 0

    # TODO(synk): torch.randint RNG stream replaced by JAX PRNG; sampling is still
    # uniform-with-replacement over the fg/bg pixel sets of the expanded crop.
    k_fg, k_bg = jax.random.split(key)

    def draw(k, count, num):
        u = jax.random.uniform(k, (n, num))
        r = jnp.floor(u * count[:, None]).astype(jnp.int32)
        hi = jnp.maximum(count[:, None].astype(jnp.int32) - 1, 0)
        return jnp.clip(r, 0, hi)

    r_fg = draw(k_fg, cnt_fg, fg_num)                 # ranks within the fg pixel set
    r_bg = draw(k_bg, cnt_bg, bg_num)

    # rank -> flat pixel index via cumsum + searchsorted (linear per mask).
    # TODO(synk): fuse the rank->index selection into the kernel via per-tile
    # prefix counts to avoid the n*P int32 cumsum round-trip.
    cs_fg = jnp.cumsum(fg_valid, axis=1, dtype=jnp.int32)
    cs_bg = jnp.cumsum(bg_valid, axis=1, dtype=jnp.int32)
    find = jax.vmap(lambda c, r: jnp.searchsorted(c, r, side="left"))
    idx_fg = jnp.clip(find(cs_fg, r_fg + 1), 0, P - 1)      # (n, fg_num)
    idx_bg = jnp.clip(find(cs_bg, r_bg + 1), 0, P - 1)      # (n, bg_num)

    # RGB gathered straight from the image (never replicated per mask).
    image_flat = image_hwc.astype(jnp.float32).reshape(P, 3)
    rgb_fg = jnp.take(image_flat, idx_fg, axis=0)            # (n, fg_num, 3)
    rgb_bg = jnp.take(image_flat, idx_bg, axis=0)            # (n, bg_num, 3)

    # Offsets reconstructed from sampled flat indices + per-mask centroid.
    inv_off = jnp.float32(1.0 / float(offset_max))

    def offsets(idx):
        v = (idx // U).astype(jnp.float32)
        u_ = (idx % U).astype(jnp.float32)
        voff = (v - vc[:, None]) * inv_off
        uoff = (u_ - uc[:, None]) * inv_off
        return voff[..., None], uoff[..., None]

    voff_fg, uoff_fg = offsets(idx_fg)
    voff_bg, uoff_bg = offsets(idx_bg)

    # Category embedding only for the sampled bg points (cat index 2 if the pixel
    # lies on another mask, else 0 -- matches torch's crop_field on ~mask).
    reg_bg = jnp.take_along_axis(region_flat, idx_bg, axis=1)     # (n, bg_num) int8
    cat_idx = jnp.where((reg_bg & 4) != 0, 2, 0)
    emb_bg = jnp.take(cat_emb, cat_idx, axis=0)                   # (n, bg_num, 3)

    fg_pts = jnp.concatenate(
        [rgb_fg, voff_fg, uoff_fg, jnp.zeros((n, fg_num, 3), jnp.float32)], axis=2)
    bg_pts = jnp.concatenate([rgb_bg, voff_bg, uoff_bg, emb_bg], axis=2)   # (n,bg,8)

    # Degenerate-mask handling: zero rows when the fg/bg set is empty (torch either
    # crashes (fg) or leaves zeros (bg)); these guards also make the clipped
    # searchsorted gather above safe when the count is 0 -- keep them coupled.
    fg_pts = jnp.where(cnt_fg[:, None, None] > 0, fg_pts, 0.0)
    bg_pts = jnp.where(cnt_bg[:, None, None] > 0, bg_pts, 0.0)

    points = jnp.concatenate([fg_pts, bg_pts], axis=1)            # (n, fg+bg, 8)
    return points.astype(jnp.float32), xyxys


if __name__ == "__main__":
    key = jax.random.PRNGKey(0)
    vMax, uMax, n = 64, 128, 3
    bg_num, fg_num = 8, 8

    # Deterministic "parameters" from __init__: cat_emb list -> (3 categories x 3)
    cat_emb = jnp.array([[0.10, 0.20, 0.30],
                         [0.40, 0.50, 0.60],
                         [0.70, 0.80, 0.90]], dtype=jnp.float32)

    k_img, k_rng = jax.random.split(key)
    image = jax.random.uniform(k_img, (vMax, uMax, 3), dtype=jnp.float32)

    masks = jnp.zeros((n, vMax, uMax), dtype=bool)
    masks = masks.at[0, 5:20, 10:40].set(True)
    masks = masks.at[1, 30:60, 50:100].set(True)
    masks = masks.at[2, 8:25, 70:120].set(True)

    points, xyxys = point_cloud_sampler_forward(
        image, masks, cat_emb, bg_num=bg_num, fg_num=fg_num,
        expand_ratio=0.2, offset_max=128.0, key=k_rng)
    jax.block_until_ready((points, xyxys))

    assert points.shape == (n, bg_num + fg_num, 8) and points.dtype == jnp.float32
    assert xyxys.shape == (n, 4) and xyxys.dtype == jnp.float32
    assert bool(jnp.all(jnp.isfinite(points))) and bool(jnp.all(jnp.isfinite(xyxys)))
    # bbox of mask 0 is known exactly: rows 5..19, cols 10..39
    expected0 = jnp.array([10.0 / uMax, 5.0 / vMax, 39.0 / uMax, 19.0 / vMax],
                          dtype=jnp.float32)
    assert bool(jnp.allclose(xyxys[0], expected0, atol=1e-5))
    # fg points only fill the first 5 channels (rgb, v_off, u_off); rest stays 0
    assert bool(jnp.all(points[:, :fg_num, 5:] == 0.0))
    print("KERNEL_OK")
</pallas_src>

<mosaic_0001>
module attributes {stable_mosaic.version = 11 : i64} {
  func.func @_sampler_kernel(%arg0: i32, %arg1: memref<1x64x128xi8, #tpu.memory_space<vmem>>, %arg2: memref<64x128xi8, #tpu.memory_space<vmem>>, %arg3: memref<1x64x128xi8, #tpu.memory_space<vmem>>, %arg4: memref<1x8x128xf32, #tpu.memory_space<vmem>>) attributes {dimension_semantics = [#tpu.dimension_semantics<parallel>], iteration_bounds = array<i64: 3>, scalar_prefetch = 0 : i64, scratch_operands = 0 : i64, tpu.core_type = #tpu.core_type<tc>, window_params = [{transform_indices = @transform_0, window_bounds = array<i64: 1, 64, 128>}, {pipeline_mode = #tpu.pipeline_mode<synchronous>, transform_indices = @transform_1, window_bounds = array<i64: 64, 128>}, {transform_indices = @transform_2, window_bounds = array<i64: 1, 64, 128>}, {transform_indices = @transform_3, window_bounds = array<i64: 1, 8, 128>}]} {
    %c0 = arith.constant 0 : index
    %c0_0 = arith.constant 0 : index
    %c0_1 = arith.constant 0 : index
    %0 = vector.load %arg1[%c0, %c0_0, %c0_1] : memref<1x64x128xi8, #tpu.memory_space<vmem>>, vector<1x64x128xi8>
    %1 = vector.shape_cast %0 : vector<1x64x128xi8> to vector<64x128xi8>
    %2 = arith.sitofp %1 : vector<64x128xi8> to vector<64x128xf32>
    %c0_2 = arith.constant 0 : index
    %c0_3 = arith.constant 0 : index
    %3 = vector.load %arg2[%c0_2, %c0_3] : memref<64x128xi8, #tpu.memory_space<vmem>>, vector<64x128xi8>
    %4 = arith.sitofp %3 : vector<64x128xi8> to vector<64x128xf32>
    %5 = tpu.iota {dimensions = array<i32: 0>} : vector<64x1xi32>
    %6 = arith.sitofp %5 : vector<64x1xi32> to vector<64x1xf32>
    %7 = tpu.iota {dimensions = array<i32: 1>} : vector<1x128xi32>
    %8 = arith.sitofp %7 : vector<1x128xi32> to vector<1x128xf32>
    %cst = arith.constant dense<0xFF800000> : vector<64xf32>
    %9 = vector.multi_reduction <maximumf>, %2, %cst [1] : vector<64x128xf32> to vector<64xf32>
    %10 = vector.shape_cast %9 : vector<64xf32> to vector<64x1xf32>
    %cst_4 = arith.constant dense<0xFF800000> : vector<128xf32>
    %11 = vector.multi_reduction <maximumf>, %2, %cst_4 [0] : vector<64x128xf32> to vector<128xf32>
    %12 = vector.shape_cast %11 : vector<128xf32> to vector<1x128xf32>
    %cst_5 = arith.constant 0.000000e+00 : f32
    %13 = vector.broadcast %cst_5 : f32 to vector<64x1xf32>
    %14 = arith.cmpf ogt, %10, %13 : vector<64x1xf32>
    %cst_6 = arith.constant 1.000000e+09 : f32
    %15 = vector.broadcast %cst_6 : f32 to vector<64x1xf32>
    %16 = arith.select %14, %6, %15 : vector<64x1xi1>, vector<64x1xf32>
    %17 = vector.shape_cast %16 : vector<64x1xf32> to vector<1x64x1xf32>
    %cst_7 = arith.constant dense<0x7F800000> : vector<1xf32>
    %18 = vector.multi_reduction <minimumf>, %17, %cst_7 [1, 2] : vector<1x64x1xf32> to vector<1xf32>
    %19 = vector.shape_cast %18 : vector<1xf32> to vector<1x1x1xf32>
    %20 = vector.extract %19[0, 0, 0] : f32 from vector<1x1x1xf32>
    %cst_8 = arith.constant 0.000000e+00 : f32
    %21 = vector.broadcast %cst_8 : f32 to vector<64x1xf32>
    %22 = arith.cmpf ogt, %10, %21 : vector<64x1xf32>
    %cst_9 = arith.constant 0.000000e+00 : f32
    %cst_10 = arith.constant 1.000000e+09 : f32
    %23 = arith.subf %cst_9, %cst_10 : f32
    %24 = vector.broadcast %23 : f32 to vector<64x1xf32>
    %25 = arith.select %22, %6, %24 : vector<64x1xi1>, vector<64x1xf32>
    %26 = vector.shape_cast %25 : vector<64x1xf32> to vector<1x64x1xf32>
    %cst_11 = arith.constant dense<0xFF800000> : vector<1xf32>
    %27 = vector.multi_reduction <maximumf>, %26, %cst_11 [1, 2] : vector<1x64x1xf32> to vector<1xf32>
    %28 = vector.shape_cast %27 : vector<1xf32> to vector<1x1x1xf32>
    %29 = vector.extract %28[0, 0, 0] : f32 from vector<1x1x1xf32>
    %cst_12 = arith.constant 0.000000e+00 : f32
    %30 = vector.broadcast %cst_12 : f32 to vector<1x128xf32>
    %31 = arith.cmpf ogt, %12, %30 : vector<1x128xf32>
    %cst_13 = arith.constant 1.000000e+09 : f32
    %32 = vector.broadcast %cst_13 : f32 to vector<1x128xf32>
    %33 = arith.select %31, %8, %32 : vector<1x128xi1>, vector<1x128xf32>
    %34 = vector.shape_cast %33 : vector<1x128xf32> to vector<1x1x128xf32>
    %cst_14 = arith.constant dense<0x7F800000> : vector<1xf32>
    %35 = vector.multi_reduction <minimumf>, %34, %cst_14 [1, 2] : vector<1x1x128xf32> to vector<1xf32>
    %36 = vector.shape_cast %35 : vector<1xf32> to vector<1x1x1xf32>
    %37 = vector.extract %36[0, 0, 0] : f32 from vector<1x1x1xf32>
    %cst_15 = arith.constant 0.000000e+00 : f32
    %38 = vector.broadcast %cst_15 : f32 to vector<1x128xf32>
    %39 = arith.cmpf ogt, %12, %38 : vector<1x128xf32>
    %cst_16 = arith.constant 0.000000e+00 : f32
    %cst_17 = arith.constant 1.000000e+09 : f32
    %40 = arith.subf %cst_16, %cst_17 : f32
    %41 = vector.broadcast %40 : f32 to vector<1x128xf32>
    %42 = arith.select %39, %8, %41 : vector<1x128xi1>, vector<1x128xf32>
    %43 = vector.shape_cast %42 : vector<1x128xf32> to vector<1x1x128xf32>
    %cst_18 = arith.constant dense<0xFF800000> : vector<1xf32>
    %44 = vector.multi_reduction <maximumf>, %43, %cst_18 [1, 2] : vector<1x1x128xf32> to vector<1xf32>
    %45 = vector.shape_cast %44 : vector<1xf32> to vector<1x1x1xf32>
    %46 = vector.extract %45[0, 0, 0] : f32 from vector<1x1x1xf32>
    %cst_19 = arith.constant 1.000000e+00 : f32
    %47 = arith.addf %29, %cst_19 : f32
    %48 = arith.subf %47, %20 : f32
    %cst_20 = arith.constant 1.000000e+00 : f32
    %49 = arith.addf %46, %cst_20 : f32
    %50 = arith.subf %49, %37 : f32
    %cst_21 = arith.constant 2.000000e-01 : f32
    %51 = arith.mulf %cst_21, %48 : f32
    %52 = math.floor %51 : f32
    %cst_22 = arith.constant 2.000000e-01 : f32
    %53 = arith.mulf %cst_22, %50 : f32
    %54 = math.floor %53 : f32
    %55 = arith.subf %20, %52 : f32
    %cst_23 = arith.constant 0.000000e+00 : f32
    %56 = arith.maximumf %cst_23, %55 : f32
    %cst_24 = arith.constant 1.000000e+00 : f32
    %57 = arith.addf %29, %cst_24 : f32
    %58 = arith.addf %57, %52 : f32
    %cst_25 = arith.constant 6.300000e+01 : f32
    %59 = arith.minimumf %58, %cst_25 : f32
    %60 = arith.subf %37, %54 : f32
    %cst_26 = arith.constant 0.000000e+00 : f32
    %61 = arith.maximumf %cst_26, %60 : f32
    %cst_27 = arith.constant 1.000000e+00 : f32
    %62 = arith.addf %46, %cst_27 : f32
    %63 = arith.addf %62, %54 : f32
    %cst_28 = arith.constant 1.270000e+02 : f32
    %64 = arith.minimumf %63, %cst_28 : f32
    %65 = vector.broadcast %56 : f32 to vector<64x1xf32>
    %66 = arith.cmpf oge, %6, %65 : vector<64x1xf32>
    %67 = vector.broadcast %59 : f32 to vector<64x1xf32>
    %68 = arith.cmpf olt, %6, %67 : vector<64x1xf32>
    %69 = arith.andi %66, %68 : vector<64x1xi1>
    %70 = arith.extui %69 : vector<64x1xi1> to vector<64x1xi32>
    %71 = arith.sitofp %70 : vector<64x1xi32> to vector<64x1xf32>
    %72 = vector.broadcast %61 : f32 to vector<1x128xf32>
    %73 = arith.cmpf oge, %8, %72 : vector<1x128xf32>
    %74 = vector.broadcast %64 : f32 to vector<1x128xf32>
    %75 = arith.cmpf olt, %8, %74 : vector<1x128xf32>
    %76 = arith.andi %73, %75 : vector<1x128xi1>
    %77 = arith.extui %76 : vector<1x128xi1> to vector<1x128xi32>
    %78 = arith.sitofp %77 : vector<1x128xi32> to vector<1x128xf32>
    %79 = vector.broadcast %71 : vector<64x1xf32> to vector<64x128xf32>
    %80 = vector.broadcast %78 : vector<1x128xf32> to vector<64x128xf32>
    %81 = arith.mulf %79, %80 : vector<64x128xf32>
    %82 = arith.mulf %2, %81 : vector<64x128xf32>
    %cst_29 = arith.constant dense<0.000000e+00> : vector<64xf32>
    %83 = vector.multi_reduction <add>, %82, %cst_29 [1] : vector<64x128xf32> to vector<64xf32>
    %84 = vector.shape_cast %83 : vector<64xf32> to vector<64x1xf32>
    %cst_30 = arith.constant dense<0.000000e+00> : vector<128xf32>
    %85 = vector.multi_reduction <add>, %82, %cst_30 [0] : vector<64x128xf32> to vector<128xf32>
    %86 = vector.shape_cast %85 : vector<128xf32> to vector<1x128xf32>
    %87 = vector.shape_cast %84 : vector<64x1xf32> to vector<1x64x1xf32>
    %cst_31 = arith.constant dense<0.000000e+00> : vector<1xf32>
    %88 = vector.multi_reduction <add>, %87, %cst_31 [1, 2] : vector<1x64x1xf32> to vector<1xf32>
    %89 = vector.shape_cast %88 : vector<1xf32> to vector<1x1x1xf32>
    %90 = vector.extract %89[0, 0, 0] : f32 from vector<1x1x1xf32>
    %91 = arith.subf %59, %56 : f32
    %cst_32 = arith.constant 0.000000e+00 : f32
    %92 = arith.maximumf %91, %cst_32 : f32
    %93 = arith.subf %64, %61 : f32
    %cst_33 = arith.constant 0.000000e+00 : f32
    %94 = arith.maximumf %93, %cst_33 : f32
    %95 = arith.mulf %92, %94 : f32
    %96 = arith.subf %95, %90 : f32
    %cst_34 = arith.constant 0.000000e+00 : f32
    %97 = arith.maximumf %96, %cst_34 : f32
    %cst_35 = arith.constant 1.000000e+00 : f32
    %98 = arith.maximumf %90, %cst_35 : f32
    %99 = arith.mulf %84, %6 : vector<64x1xf32>
    %100 = vector.shape_cast %99 : vector<64x1xf32> to vector<1x64x1xf32>
    %cst_36 = arith.constant dense<0.000000e+00> : vector<1xf32>
    %101 = vector.multi_reduction <add>, %100, %cst_36 [1, 2] : vector<1x64x1xf32> to vector<1xf32>
    %102 = vector.shape_cast %101 : vector<1xf32> to vector<1x1x1xf32>
    %103 = vector.extract %102[0, 0, 0] : f32 from vector<1x1x1xf32>
    %104 = arith.divf %103, %98 : f32
    %105 = arith.mulf %86, %8 : vector<1x128xf32>
    %106 = vector.shape_cast %105 : vector<1x128xf32> to vector<1x1x128xf32>
    %cst_37 = arith.constant dense<0.000000e+00> : vector<1xf32>
    %107 = vector.multi_reduction <add>, %106, %cst_37 [1, 2] : vector<1x1x128xf32> to vector<1xf32>
    %108 = vector.shape_cast %107 : vector<1xf32> to vector<1x1x1xf32>
    %109 = vector.extract %108[0, 0, 0] : f32 from vector<1x1x1xf32>
    %110 = arith.divf %109, %98 : f32
    %111 = arith.subf %4, %2 : vector<64x128xf32>
    %cst_38 = arith.constant 2.000000e+00 : f32
    %112 = vector.broadcast %cst_38 : f32 to vector<64x128xf32>
    %113 = arith.mulf %112, %81 : vector<64x128xf32>
    %114 = arith.subf %113, %82 : vector<64x128xf32>
    %cst_39 = arith.constant 4.000000e+00 : f32
    %115 = vector.broadcast %cst_39 : f32 to vector<64x128xf32>
    %116 = arith.mulf %115, %111 : vector<64x128xf32>
    %117 = arith.addf %114, %116 : vector<64x128xf32>
    %118 = arith.fptosi %117 : vector<64x128xf32> to vector<64x128xi32>
    %119 = arith.trunci %118 : vector<64x128xi32> to vector<64x128xi8>
    %c0_40 = arith.constant 0 : index
    %c0_41 = arith.constant 0 : index
    %c0_42 = arith.constant 0 : index
    %120 = vector.load %arg3[%c0_40, %c0_41, %c0_42] : memref<1x64x128xi8, #tpu.memory_space<vmem>>, vector<1x64x128xi8>
    %121 = vector.shape_cast %120 : vector<1x64x128xi8> to vector<64x128xi8>
    %122 = vector.shape_cast %119 : vector<64x128xi8> to vector<1x64x128xi8>
    tpu.vector_store %arg3[%c0_40, %c0_41, %c0_42], %122 {strides = array<i32>} : memref<1x64x128xi8, #tpu.memory_space<vmem>>, vector<1x64x128xi8>,
    %123 = tpu.iota {dimensions = array<i32: 0>} : vector<8x128xi32>
    %c0_i32 = arith.constant 0 : i32
    %124 = vector.broadcast %c0_i32 : i32 to vector<8x128xi32>
    %125 = arith.cmpi eq, %123, %124 : vector<8x128xi32>
    %c1_i32 = arith.constant 1 : i32
    %126 = vector.broadcast %c1_i32 : i32 to vector<8x128xi32>
    %127 = arith.cmpi eq, %123, %126 : vector<8x128xi32>
    %c2_i32 = arith.constant 2 : i32
    %128 = vector.broadcast %c2_i32 : i32 to vector<8x128xi32>
    %129 = arith.cmpi eq, %123, %128 : vector<8x128xi32>
    %c3_i32 = arith.constant 3 : i32
    %130 = vector.broadcast %c3_i32 : i32 to vector<8x128xi32>
    %131 = arith.cmpi eq, %123, %130 : vector<8x128xi32>
    %c4_i32 = arith.constant 4 : i32
    %132 = vector.broadcast %c4_i32 : i32 to vector<8x128xi32>
    %133 = arith.cmpi eq, %123, %132 : vector<8x128xi32>
    %c5_i32 = arith.constant 5 : i32
    %134 = vector.broadcast %c5_i32 : i32 to vector<8x128xi32>
    %135 = arith.cmpi eq, %123, %134 : vector<8x128xi32>
    %c6_i32 = arith.constant 6 : i32
    %136 = vector.broadcast %c6_i32 : i32 to vector<8x128xi32>
    %137 = arith.cmpi eq, %123, %136 : vector<8x128xi32>
    %138 = vector.broadcast %104 : f32 to vector<8x128xf32>
    %139 = vector.broadcast %110 : f32 to vector<8x128xf32>
    %140 = arith.select %137, %138, %139 : vector<8x128xi1>, vector<8x128xf32>
    %141 = vector.broadcast %97 : f32 to vector<8x128xf32>
    %142 = arith.select %135, %141, %140 : vector<8x128xi1>, vector<8x128xf32>
    %143 = vector.broadcast %90 : f32 to vector<8x128xf32>
    %144 = arith.select %133, %143, %142 : vector<8x128xi1>, vector<8x128xf32>
    %145 = vector.broadcast %29 : f32 to vector<8x128xf32>
    %146 = arith.select %131, %145, %144 : vector<8x128xi1>, vector<8x128xf32>
    %147 = vector.broadcast %46 : f32 to vector<8x128xf32>
    %148 = arith.select %129, %147, %146 : vector<8x128xi1>, vector<8x128xf32>
    %149 = vector.broadcast %20 : f32 to vector<8x128xf32>
    %150 = arith.select %127, %149, %148 : vector<8x128xi1>, vector<8x128xf32>
    %151 = vector.broadcast %37 : f32 to vector<8x128xf32>
    %152 = arith.select %125, %151, %150 : vector<8x128xi1>, vector<8x128xf32>
    %c0_43 = arith.constant 0 : index
    %c0_44 = arith.constant 0 : index
    %c0_45 = arith.constant 0 : index
    %153 = vector.load %arg4[%c0_43, %c0_44, %c0_45] : memref<1x8x128xf32, #tpu.memory_space<vmem>>, vector<1x8x128xf32>
    %154 = vector.shape_cast %153 : vector<1x8x128xf32> to vector<8x128xf32>
    %155 = vector.shape_cast %152 : vector<8x128xf32> to vector<1x8x128xf32>
    tpu.vector_store %arg4[%c0_43, %c0_44, %c0_45], %155 {strides = array<i32>} : memref<1x8x128xf32, #tpu.memory_space<vmem>>, vector<1x8x128xf32>,
    return
  }
  func.func @transform_0(%arg0: i32) -> (i32, i32, i32) {
    %c0_i32 = arith.constant 0 : i32
    %c0_i32_0 = arith.constant 0 : i32
    %c0_i32_1 = arith.constant 0 : i32
    return %arg0, %c0_i32, %c0_i32_0 : i32, i32, i32
  }
  func.func @transform_1(%arg0: i32) -> (i32, i32) {
    %c0_i32 = arith.constant 0 : i32
    %c0_i32_0 = arith.constant 0 : i32
    %c0_i32_1 = arith.constant 0 : i32
    return %c0_i32, %c0_i32_0 : i32, i32
  }
  func.func @transform_2(%arg0: i32) -> (i32, i32, i32) {
    %c0_i32 = arith.constant 0 : i32
    %c0_i32_0 = arith.constant 0 : i32
    %c0_i32_1 = arith.constant 0 : i32
    return %arg0, %c0_i32, %c0_i32_0 : i32, i32, i32
  }
  func.func @transform_3(%arg0: i32) -> (i32, i32, i32) {
    %c0_i32 = arith.constant 0 : i32
    %c0_i32_0 = arith.constant 0 : i32
    %c0_i32_1 = arith.constant 0 : i32
    return %arg0, %c0_i32, %c0_i32_0 : i32, i32, i32
  }
}

</mosaic_0001>

<llo_original>
// kernel: tpu_custom_call.1
$region0: #{tpu_custom_call.1}
  #allocation0 [shape = 'u32[]', space=smem, size = 0x4, offset = 0x4, fixed_abs, tag = 'smem constant byte address 0x4 - core index']
  #allocation1 [shape = 'u32[144,128]{1,0:T(1,128)}', space=vmem, size = 0x12000, scoped, tag = 'internal scratch']
  %s0 = inlined_call_operand.hbm [shape: s8[3,64,128], index: 0, kind: input, shape index: {}]
  %s1 = inlined_call_operand.hbm [shape: s8[64,128], index: 1, kind: input, shape index: {}]
  %s2 = inlined_call_operand.hbm [shape: s8[3,64,128], index: 2, kind: output, shape index: {0}]
  %s3 = inlined_call_operand.hbm [shape: f32[3,8,128], index: 3, kind: output, shape index: {1}]
  %4 = xla_tuple %s2, %s3
  %s5 = sld [smem:[#allocation0]]
  $region57: #{tpu_custom_call.1} parent=0
    _
  %s7 = ssub.s32 1, %s5
  %s8 = scalar_select 0, %s7, %s5
  $region1: #{tpu_custom_call.1} parent=0
    #allocation2 [shape = 'u8[16384]{0}', space=vmem, size = 0x4000, scoped, tag = 'input window, operand 0']
    #allocation3 [shape = 's32[2]{0}', space=sflag, size = 0x8, scoped, tag = 'scoped memory for tpu_custom_call.1']
    #allocation4 [shape = 's32[2]{0}', space=sflag, size = 0x8, scoped, tag = 'scoped memory for tpu_custom_call.1']
    #allocation5 [shape = 'u8[8192]{0}', space=vmem, size = 0x2000, scoped, tag = 'input window, operand 1, single buffered']
    #allocation6 [shape = 's32[1]{0}', space=sflag, size = 0x4, scoped, tag = 'scoped memory for tpu_custom_call.1']
    #allocation7 [shape = 'u8[16384]{0}', space=vmem, size = 0x4000, scoped, tag = 'output window, operand 0']
    #allocation8 [shape = 'u8[8192]{0}', space=vmem, size = 0x2000, scoped, tag = 'output window, operand 1']
    #allocation9 [shape = 's32[2]{0}', space=sflag, size = 0x8, scoped, tag = 'scoped memory for tpu_custom_call.1']
    %9 = vsyncpa [#allocation3], 0
    %s10 = scalar_lea.sflag [#allocation3], 1
    %11 = vsyncpa %s10, 0
    %12 = vsyncpa [#allocation6], 0
    %13 = vsyncpa [#allocation4], 0
    %s14 = scalar_lea.sflag [#allocation4], 1
    %15 = vsyncpa %s14, 0
    %16 = vsyncpa [#allocation9], 0
    %s17 = scalar_lea.sflag [#allocation9], 1
    %18 = vsyncpa %s17, 0
    loop: start=0, step=1, limit=5
    $region2: #{tpu_custom_call.1} parent=1 // loop_pre_header
      _
    $region3: #{tpu_custom_call.1} parent=1 // loop_header
      %s20 = sphi 0, %s24
      %p21 = scmp.ge.s32.totalorder %s20, 5
      %s30 = sphi 0, %s32
      %s33 = sphi 0, %s30
      %s34 = sphi 0, %s33
      %s50 = sphi 0, %s34
      %s54 = sphi 0, %s54
      %s56 = sphi 0, %s54
      %s57 = sphi 0, %s56
      %s71 = sphi 0, %s57
      %s77 = sphi 0, %s79
      %s80 = sphi 0, %s77
      %s81 = sphi 0, %s80
      %s97 = sphi 0, %s81
      %s103 = sphi 0, %s105
      %s106 = sphi 0, %s103
      %s107 = sphi 0, %s106
      %s123 = sphi 0, %s107
    $region4: #{tpu_custom_call.1} parent=1 // loop_header_branch
      %23 = sbr.rel (%p21) target = $region8
    $region5: #{tpu_custom_call.1} parent=1 // loop_body
      %s25 = ssub.s32 %s20, 1
      %s26 = ssub.s32 %s20, 2
      %s27 = sadd.s32 %s20, 1
      %s28 = ssub.s32 %s20, %s27
      %p29 = scmp.eq.s32.totalorder %s28, 0
      %s31 = sadd.s32 %s30, 1
      %s32 = scalar_select %p29, %s30, %s31
      %p35 = pneg %p29
      %p36 = scmp.eq.s32.totalorder %s20, 2
      %p37 = por %p35, %p36
      %p38 = scmp.ne.s32.totalorder %s30, %s33
      %p39 = scmp.eq.s32.totalorder %s20, 0
      %p40 = por %p38, %p39
      %p41 = scmp.ne.s32.totalorder %s30, %s33
      %p42 = scmp.eq.s32.totalorder %s25, 2
      %p43 = por %p41, %p42
      %p44 = scmp.ne.s32.totalorder %s33, %s34
      %p45 = scmp.eq.s32.totalorder %s25, 0
      %p46 = por %p44, %p45
      %p47 = scmp.ne.s32.totalorder %s33, %s34
      %p48 = scmp.eq.s32.totalorder %s26, 2
      %p49 = por %p47, %p48
      %p51 = scmp.ne.s32.totalorder %s34, %s50
      %p52 = scmp.eq.s32.totalorder %s26, 0
      %p53 = por %p51, %p52
      %s55 = sadd.s32 %s54, 1
      %p58 = scmp.eq.s32.totalorder %s20, 2
      %p59 = scmp.ne.s32.totalorder %s54, %s56
      %p60 = scmp.eq.s32.totalorder %s20, 0
      %p61 = por %p59, %p60
      %p62 = scmp.ne.s32.totalorder %s54, %s56
      %p63 = scmp.eq.s32.totalorder %s25, 2
      %p64 = por %p62, %p63
      %p65 = scmp.ne.s32.totalorder %s56, %s57
      %p66 = scmp.eq.s32.totalorder %s25, 0
      %p67 = por %p65, %p66
      %p68 = scmp.ne.s32.totalorder %s56, %s57
      %p69 = scmp.eq.s32.totalorder %s26, 2
      %p70 = por %p68, %p69
      %p72 = scmp.ne.s32.totalorder %s57, %s71
      %p73 = scmp.eq.s32.totalorder %s26, 0
      %p74 = por %p72, %p73
      %s75 = ssub.s32 %s20, %s27
      %p76 = scmp.eq.s32.totalorder %s75, 0
      %s78 = sadd.s32 %s77, 1
      %s79 = scalar_select %p76, %s77, %s78
      %p82 = pneg %p76
      %p83 = scmp.eq.s32.totalorder %s20, 2
      %p84 = por %p82, %p83
      %p85 = scmp.ne.s32.totalorder %s77, %s80
      %p86 = scmp.eq.s32.totalorder %s20, 0
      %p87 = por %p85, %p86
      %p88 = scmp.ne.s32.totalorder %s77, %s80
      %p89 = scmp.eq.s32.totalorder %s25, 2
      %p90 = por %p88, %p89
      %p91 = scmp.ne.s32.totalorder %s80, %s81
      %p92 = scmp.eq.s32.totalorder %s25, 0
      %p93 = por %p91, %p92
      %p94 = scmp.ne.s32.totalorder %s80, %s81
      %p95 = scmp.eq.s32.totalorder %s26, 2
      %p96 = por %p94, %p95
      %p98 = scmp.ne.s32.totalorder %s81, %s97
      %p99 = scmp.eq.s32.totalorder %s26, 0
      %p100 = por %p98, %p99
      %s101 = ssub.s32 %s20, %s27
      %p102 = scmp.eq.s32.totalorder %s101, 0
      %s104 = sadd.s32 %s103, 1
      %s105 = scalar_select %p102, %s103, %s104
      %p108 = pneg %p102
      %p109 = scmp.eq.s32.totalorder %s20, 2
      %p110 = por %p108, %p109
      %p111 = scmp.ne.s32.totalorder %s103, %s106
      %p112 = scmp.eq.s32.totalorder %s20, 0
      %p113 = por %p111, %p112
      %p114 = scmp.ne.s32.totalorder %s103, %s106
      %p115 = scmp.eq.s32.totalorder %s25, 2
      %p116 = por %p114, %p115
      %p117 = scmp.ne.s32.totalorder %s106, %s107
      %p118 = scmp.eq.s32.totalorder %s25, 0
      %p119 = por %p117, %p118
      %p120 = scmp.ne.s32.totalorder %s106, %s107
      %p121 = scmp.eq.s32.totalorder %s26, 2
      %p122 = por %p120, %p121
      %p124 = scmp.ne.s32.totalorder %s107, %s123
      %p125 = scmp.eq.s32.totalorder %s26, 0
      %p126 = por %p124, %p125
      %p127 = scmp.le.s32.totalorder 1, %s20
      %p128 = scmp.lt.s32.totalorder %s20, 4
      %p129 = pnand %p127, %p128
      %p130 = pneg %p129
      // Predicated region
      $region9: #{tpu_custom_call.1} parent=5 // pred_check
        _
      $region10: #{tpu_custom_call.1} parent=5 // pred_check_branch
        %132 = sbr.rel (%p129) target = $region12
      $region11: #{tpu_custom_call.1} parent=5 // pred_region
        %s133 = ssub.s32 %s20, 1
        // Predicated region
        $region13: #{tpu_custom_call.1} parent=11 // pred_check
          %p134 = pneg %p67
        $region14: #{tpu_custom_call.1} parent=11 // pred_check_branch
          %136 = sbr.rel (%p134) target = $region16
        $region15: #{tpu_custom_call.1} parent=11 // pred_region
          %s138 = ssub.s32 256, 256
          %139 = vsyncadd [#allocation6], %s138
          %s140 = sshll.u32 [#allocation5], 4
          %s141 = int_to_ptr.vmem [resolvable:$true] %s140
          %146 = dma.hbm_to_vmem [thread:$0]  %s1, 256, %s141, [#allocation6], 128, 128, 8
        $region16: #{tpu_custom_call.1} parent=11 // pred_fallthru
          _
      $region12: #{tpu_custom_call.1} parent=5 // pred_fallthru
        _
      %p147 = scmp.lt.s32.totalorder %s20, 3
      // Predicated region
      $region17: #{tpu_custom_call.1} parent=5 // pred_check
        %p148 = pneg %p147
      $region18: #{tpu_custom_call.1} parent=5 // pred_check_branch
        %150 = sbr.rel (%p148) target = $region20
      $region19: #{tpu_custom_call.1} parent=5 // pred_region
        // Predicated region
        $region21: #{tpu_custom_call.1} parent=19 // pred_check
          %p151 = pneg %p40
        $region22: #{tpu_custom_call.1} parent=19 // pred_check_branch
          %153 = sbr.rel (%p151) target = $region24
        $region23: #{tpu_custom_call.1} parent=19 // pred_region
          %s154 = sand.u32 %s30, 1
          %s155 = scalar_lea.sflag [#allocation3], %s154
          %s156 = sand.u32 %s30, 1
          %s157 = smul.addr %s156, 16
          %s158 = scalar_lea.vmem [#allocation2], %s157
          %s160 = ssub.s32 256, 256
          %161 = vsyncadd %s155, %s160
          %s162 = smul.addr %s20, 2
          %s163 = smul.addr %s162, 128
          %s164 = scalar_lea.hbm %s0, %s163
          %s165 = sshll.u32 %s158, 4
          %s166 = int_to_ptr.vmem [resolvable:$true] %s165
          %171 = dma.hbm_to_vmem [thread:$0]  %s164, 256, %s166, %s155, 128, 128, 8
        $region24: #{tpu_custom_call.1} parent=19 // pred_fallthru
          _
      $region20: #{tpu_custom_call.1} parent=5 // pred_fallthru
        _
      %p172 = scmp.le.s32.totalorder 1, %s20
      %p173 = scmp.lt.s32.totalorder %s20, 4
      %p174 = pnand %p172, %p173
      %p175 = pneg %p174
      // Predicated region
      $region25: #{tpu_custom_call.1} parent=5 // pred_check
        _
      $region26: #{tpu_custom_call.1} parent=5 // pred_check_branch
        %177 = sbr.rel (%p174) target = $region28
      $region27: #{tpu_custom_call.1} parent=5 // pred_region
        %s178 = ssub.s32 %s20, 1
        %s179 = sand.u32 %s33, 1
        %s180 = scalar_lea.sflag [#allocation3], %s179
        %s181 = sand.u32 %s33, 1
        %s182 = smul.addr %s181, 16
        %s183 = scalar_lea.vmem [#allocation2], %s182
        // Predicated region
        $region29: #{tpu_custom_call.1} parent=27 // pred_check
          %p184 = pneg %p46
        $region30: #{tpu_custom_call.1} parent=27 // pred_check_branch
          %186 = sbr.rel (%p184) target = $region32
        $region31: #{tpu_custom_call.1} parent=27 // pred_region
          %187 = dma.done %s180, 256
        $region32: #{tpu_custom_call.1} parent=27 // pred_fallthru
          _
        // Predicated region
        $region33: #{tpu_custom_call.1} parent=27 // pred_check
          %p188 = pneg %p67
        $region34: #{tpu_custom_call.1} parent=27 // pred_check_branch
          %190 = sbr.rel (%p188) target = $region36
        $region35: #{tpu_custom_call.1} parent=27 // pred_region
          %191 = dma.done [#allocation6], 256
        $region36: #{tpu_custom_call.1} parent=27 // pred_fallthru
          _
        %s192 = sand.u32 %s33, 1
        %s193 = scalar_lea.sflag [#allocation3], %s192
        %s194 = sand.u32 %s33, 1
        %s195 = smul.addr %s194, 16
        %s196 = scalar_lea.vmem [#allocation2], %s195
        %p197 = pneg %p46
        %p198 = pneg %p43
        %p199 = pneg %p67
        %p200 = pneg %p64
        %p201 = pneg %p93
        %p202 = pneg %p90
        %s203 = sand.u32 %s80, 1
        %s204 = scalar_lea.sflag [#allocation4], %s203
        %s205 = sand.u32 %s80, 1
        %s206 = smul.addr %s205, 16
        %s207 = scalar_lea.vmem [#allocation7], %s206
        %p208 = pneg %p119
        %p209 = pneg %p116
        %s210 = sand.u32 %s106, 1
        %s211 = scalar_lea.sflag [#allocation9], %s210
        %s212 = sand.u32 %s106, 1
        %s213 = smul.addr %s212, 8
        %s214 = scalar_lea.vmem [#allocation8], %s213
        %v215 = vld [vmem:[%s183] sm:$0xff]
        %v216 = vld [vmem:[%s183 + $0x8] sm:$0xff]
        %v217 = vunpack.c.0.s8 %v215
        %v218 = vunpack.c.1.s8 %v215
        %v219 = vunpack.c.2.s8 %v215
        %v220 = vunpack.c.3.s8 %v215
        %v221 = vunpack.c.0.s8 %v216
        %v222 = vunpack.c.1.s8 %v216
        %v223 = vunpack.c.2.s8 %v216
        %v224 = vunpack.c.3.s8 %v216
        %v225 = vcvt.s32.f32 %v217
        %v226 = vcvt.s32.f32 %v218
        %v227 = vcvt.s32.f32 %v219
        %v228 = vcvt.s32.f32 %v220
        %v229 = vcvt.s32.f32 %v221
        %v230 = vcvt.s32.f32 %v222
        %v231 = vcvt.s32.f32 %v223
        %v232 = vcvt.s32.f32 %v224
        %v233 = vld [vmem:[#allocation5] sm:$0xff]
        %v234 = vld [vmem:[#allocation5 + $0x8] sm:$0xff]
        %v235 = vunpack.c.0.s8 %v233
        %v236 = vunpack.c.1.s8 %v233
        %v237 = vunpack.c.2.s8 %v233
        %v238 = vunpack.c.3.s8 %v233
        %v239 = vunpack.c.0.s8 %v234
        %v240 = vunpack.c.1.s8 %v234
        %v241 = vunpack.c.2.s8 %v234
        %v242 = vunpack.c.3.s8 %v234
        %v243 = vcvt.s32.f32 %v235
        %v244 = vcvt.s32.f32 %v236
        %v245 = vcvt.s32.f32 %v237
        %v246 = vcvt.s32.f32 %v238
        %v247 = vcvt.s32.f32 %v239
        %v248 = vcvt.s32.f32 %v240
        %v249 = vcvt.s32.f32 %v241
        %v250 = vcvt.s32.f32 %v242
        %v251 = vlaneseq
        %v252 = vshrl.u32 %v251, 7
        %v253 = vadd.s32 %v252, 8
        %v254 = vadd.s32 %v252, 16
        %v255 = vadd.s32 %v252, 24
        %v256 = vadd.s32 %v252, 32
        %v257 = vadd.s32 %v252, 40
        %v258 = vadd.s32 %v252, 48
        %v259 = vadd.s32 %v252, 56
        %v260 = vcvt.s32.f32 %v252
        %v261 = vcvt.s32.f32 %v253
        %v262 = vcvt.s32.f32 %v254
        %v263 = vcvt.s32.f32 %v255
        %v264 = vcvt.s32.f32 %v256
        %v265 = vcvt.s32.f32 %v257
        %v266 = vcvt.s32.f32 %v258
        %v267 = vcvt.s32.f32 %v259
        %v268 = vlaneseq
        %v269 = vand.u32 %v268, 127
        %v270 = vcvt.s32.f32 %v269
        %271 = vmax.xlane.f32.xlu0 %v225
        %v272 = vpop.xlane.xlu0 %271
        %273 = vmax.xlane.f32.xlu0 %v226
        %v274 = vpop.xlane.xlu0 %273
        %275 = vmax.xlane.f32.xlu0 %v227
        %v276 = vpop.xlane.xlu0 %275
        %277 = vmax.xlane.f32.xlu0 %v228
        %v278 = vpop.xlane.xlu0 %277
        %279 = vmax.xlane.f32.xlu0 %v229
        %v280 = vpop.xlane.xlu0 %279
        %281 = vmax.xlane.f32.xlu0 %v230
        %v282 = vpop.xlane.xlu0 %281
        %283 = vmax.xlane.f32.xlu0 %v231
        %v284 = vpop.xlane.xlu0 %283
        %285 = vmax.xlane.f32.xlu0 %v232
        %v286 = vpop.xlane.xlu0 %285
        %v287 = vmax.f32 %v225, %v229
        %v288 = vmax.f32 %v226, %v230
        %v289 = vmax.f32 %v227, %v231
        %v290 = vmax.f32 %v228, %v232
        %v291 = vmax.f32 %v287, %v288
        %v292 = vmax.f32 %v289, %v290
        %v293 = vmax.f32 %v291, %v292
        %v294 = vrot.slane %v293, 4
        %v295 = vmax.f32 %v293, %v294
        %v296 = vrot.slane %v295, 2
        %v297 = vmax.f32 %v295, %v296
        %v298 = vrot.slane %v297, 1
        %v299 = vmax.f32 %v297, %v298
        %vm300 = vcmp.gt.f32.partialorder %v272, 0.0
        %vm301 = vcmp.gt.f32.partialorder %v274, 0.0
        %vm302 = vcmp.gt.f32.partialorder %v276, 0.0
        %vm303 = vcmp.gt.f32.partialorder %v278, 0.0
        %vm304 = vcmp.gt.f32.partialorder %v280, 0.0
        %vm305 = vcmp.gt.f32.partialorder %v282, 0.0
        %vm306 = vcmp.gt.f32.partialorder %v284, 0.0
        %vm307 = vcmp.gt.f32.partialorder %v286, 0.0
        %v308 = vsel %vm300, %v260, 1e+09
        %v309 = vsel %vm301, %v261, 1e+09
        %v310 = vsel %vm302, %v262, 1e+09
        %v311 = vsel %vm303, %v263, 1e+09
        %v312 = vsel %vm304, %v264, 1e+09
        %v313 = vsel %vm305, %v265, 1e+09
        %v314 = vsel %vm306, %v266, 1e+09
        %v315 = vsel %vm307, %v267, 1e+09
        %v316 = vmin.f32 %v308, %v312
        %v317 = vmin.f32 %v309, %v313
        %v318 = vmin.f32 %v310, %v314
        %v319 = vmin.f32 %v311, %v315
        %v320 = vmin.f32 %v316, %v317
        %v321 = vmin.f32 %v318, %v319
        %v322 = vmin.f32 %v320, %v321
        %v323 = vrot.slane %v322, 4
        %v324 = vmin.f32 %v322, %v323
        %v325 = vrot.slane %v324, 2
        %v326 = vmin.f32 %v324, %v325
        %v327 = vrot.slane %v326, 1
        %v328 = vmin.f32 %v326, %v327
        %s329 = vtos %v328
        %v330 = vsel %vm300, %v260, -1e+09
        %v331 = vsel %vm301, %v261, -1e+09
        %v332 = vsel %vm302, %v262, -1e+09
        %v333 = vsel %vm303, %v263, -1e+09
        %v334 = vsel %vm304, %v264, -1e+09
        %v335 = vsel %vm305, %v265, -1e+09
        %v336 = vsel %vm306, %v266, -1e+09
        %v337 = vsel %vm307, %v267, -1e+09
        %v338 = vmax.f32 %v330, %v334
        %v339 = vmax.f32 %v331, %v335
        %v340 = vmax.f32 %v332, %v336
        %v341 = vmax.f32 %v333, %v337
        %v342 = vmax.f32 %v338, %v339
        %v343 = vmax.f32 %v340, %v341
        %v344 = vmax.f32 %v342, %v343
        %v345 = vrot.slane %v344, 4
        %v346 = vmax.f32 %v344, %v345
        %v347 = vrot.slane %v346, 2
        %v348 = vmax.f32 %v346, %v347
        %v349 = vrot.slane %v348, 1
        %v350 = vmax.f32 %v348, %v349
        %s351 = vtos %v350
        %vm352 = vcmp.gt.f32.partialorder %v299, 0.0
        %v353 = vsel %vm352, %v270, 1e+09
        %354 = vmin.xlane.f32.xlu0 %v353
        %v355 = vpop.xlane.xlu0 %354
        %s356 = vtos %v355
        %v357 = vsel %vm352, %v270, -1e+09
        %358 = vmax.xlane.f32.xlu0 %v357
        %v359 = vpop.xlane.xlu0 %358
        %s360 = vtos %v359
        %s361 = sadd.f32 %s351, 1.0
        %s362 = ssub.f32 %s361, %s329
        %s363 = sadd.f32 %s360, 1.0
        %s364 = ssub.f32 %s363, %s356
        %s365 = smul.f32 %s362, 0.2
        %s366 = sfloor.f32 %s365
        %s367 = smul.f32 %s364, 0.2
        %s368 = sfloor.f32 %s367
        %s369 = ssub.f32 %s329, %s366
        %s370 = smax.f32 %s369, 0.0
        %s371 = sadd.f32 %s361, %s366
        %s372 = smin.f32 %s371, 63.0
        %s373 = ssub.f32 %s356, %s368
        %s374 = smax.f32 %s373, 0.0
        %s375 = sadd.f32 %s363, %s368
        %s376 = smin.f32 %s375, 127.0
        %v377 = vstv %s370
        %vm378 = vcmp.ge.f32.partialorder %v260, %v377
        %vm379 = vcmp.ge.f32.partialorder %v261, %v377
        %vm380 = vcmp.ge.f32.partialorder %v262, %v377
        %vm381 = vcmp.ge.f32.partialorder %v263, %v377
        %vm382 = vcmp.ge.f32.partialorder %v264, %v377
        %vm383 = vcmp.ge.f32.partialorder %v265, %v377
        %vm384 = vcmp.ge.f32.partialorder %v266, %v377
        %vm385 = vcmp.ge.f32.partialorder %v267, %v377
        %v386 = vstv %s372
        %vm387 = vcmp.lt.f32.partialorder %v260, %v386
        %vm388 = vcmp.lt.f32.partialorder %v261, %v386
        %vm389 = vcmp.lt.f32.partialorder %v262, %v386
        %vm390 = vcmp.lt.f32.partialorder %v263, %v386
        %vm391 = vcmp.lt.f32.partialorder %v264, %v386
        %vm392 = vcmp.lt.f32.partialorder %v265, %v386
        %vm393 = vcmp.lt.f32.partialorder %v266, %v386
        %vm394 = vcmp.lt.f32.partialorder %v267, %v386
        %vm395 = vmand %vm378, %vm387
        %vm396 = vmand %vm379, %vm388
        %vm397 = vmand %vm380, %vm389
        %vm398 = vmand %vm381, %vm390
        %vm399 = vmand %vm382, %vm391
        %vm400 = vmand %vm383, %vm392
        %vm401 = vmand %vm384, %vm393
        %vm402 = vmand %vm385, %vm394
        %v403 = vsel %vm395, 1, 0
        %v404 = vsel %vm396, 1, 0
        %v405 = vsel %vm397, 1, 0
        %v406 = vsel %vm398, 1, 0
        %v407 = vsel %vm399, 1, 0
        %v408 = vsel %vm400, 1, 0
        %v409 = vsel %vm401, 1, 0
        %v410 = vsel %vm402, 1, 0
        %v411 = vcvt.s32.f32 %v403
        %v412 = vcvt.s32.f32 %v404
        %v413 = vcvt.s32.f32 %v405
        %v414 = vcvt.s32.f32 %v406
        %v415 = vcvt.s32.f32 %v407
        %v416 = vcvt.s32.f32 %v408
        %v417 = vcvt.s32.f32 %v409
        %v418 = vcvt.s32.f32 %v410
        %v419 = vstv %s374
        %vm420 = vcmp.ge.f32.partialorder %v270, %v419
        %v421 = vstv %s376
        %vm422 = vcmp.lt.f32.partialorder %v270, %v421
        %vm423 = vmand %vm420, %vm422
        %v424 = vsel %vm423, 1, 0
        %v425 = vcvt.s32.f32 %v424
        %v426 = vmul.f32 %v411, %v425
        %v427 = vmul.f32 %v412, %v425
        %v428 = vmul.f32 %v413, %v425
        %v429 = vmul.f32 %v414, %v425
        %v430 = vmul.f32 %v415, %v425
        %v431 = vmul.f32 %v416, %v425
        %v432 = vmul.f32 %v417, %v425
        %v433 = vmul.f32 %v418, %v425
        %v434 = vmul.f32 %v225, %v426
        %v435 = vmul.f32 %v226, %v427
        %v436 = vmul.f32 %v227, %v428
        %v437 = vmul.f32 %v228, %v429
        %v438 = vmul.f32 %v229, %v430
        %v439 = vmul.f32 %v230, %v431
        %v440 = vmul.f32 %v231, %v432
        %v441 = vmul.f32 %v232, %v433
        %442 = vadd.xlane.f32.xlu0 %v434
        %v443 = vpop.xlane.xlu0 %442
        %444 = vadd.xlane.f32.xlu0 %v435
        %v445 = vpop.xlane.xlu0 %444
        %446 = vadd.xlane.f32.xlu0 %v436
        %v447 = vpop.xlane.xlu0 %446
        %448 = vadd.xlane.f32.xlu0 %v437
        %v449 = vpop.xlane.xlu0 %448
        %450 = vadd.xlane.f32.xlu0 %v438
        %v451 = vpop.xlane.xlu0 %450
        %452 = vadd.xlane.f32.xlu0 %v439
        %v453 = vpop.xlane.xlu0 %452
        %454 = vadd.xlane.f32.xlu0 %v440
        %v455 = vpop.xlane.xlu0 %454
        %456 = vadd.xlane.f32.xlu0 %v441
        %v457 = vpop.xlane.xlu0 %456
        %v458 = vadd.f32 %v434, %v435
        %v459 = vadd.f32 %v458, %v436
        %v460 = vadd.f32 %v459, %v437
        %v461 = vadd.f32 %v460, %v438
        %v462 = vadd.f32 %v461, %v439
        %v463 = vadd.f32 %v462, %v440
        %v464 = vadd.f32 %v463, %v441
        %v465 = vrot.slane %v464, 4
        %v466 = vadd.f32 %v464, %v465
        %v467 = vrot.slane %v466, 2
        %v468 = vadd.f32 %v466, %v467
        %v469 = vrot.slane %v468, 1
        %v470 = vadd.f32 %v468, %v469
        %vm471 = vcmask 7168
        %v472 = vsel %vm471, %v443, 0.0
        %v473 = vsel %vm471, %v445, 0.0
        %v474 = vadd.f32 %v472, %v473
        %v475 = vsel %vm471, %v447, 0.0
        %v476 = vadd.f32 %v474, %v475
        %v477 = vsel %vm471, %v449, 0.0
        %v478 = vadd.f32 %v476, %v477
        %v479 = vsel %vm471, %v451, 0.0
        %v480 = vadd.f32 %v478, %v479
        %v481 = vsel %vm471, %v453, 0.0
        %v482 = vadd.f32 %v480, %v481
        %v483 = vsel %vm471, %v455, 0.0
        %v484 = vadd.f32 %v482, %v483
        %v485 = vsel %vm471, %v457, 0.0
        %v486 = vadd.f32 %v484, %v485
        %487 = vadd.xlane.f32.xlu0 %v486
        %v488 = vpop.xlane.xlu0 %487
        %v489 = vrot.slane %v488, 4
        %v490 = vadd.f32 %v488, %v489
        %v491 = vrot.slane %v490, 2
        %v492 = vadd.f32 %v490, %v491
        %v493 = vrot.slane %v492, 1
        %v494 = vadd.f32 %v492, %v493
        %s495 = vtos %v494
        %s496 = ssub.f32 %s372, %s370
        %s497 = smax.f32 %s496, 0.0
        %s498 = ssub.f32 %s376, %s374
        %s499 = smax.f32 %s498, 0.0
        %s500 = smul.f32 %s497, %s499
        %s501 = ssub.f32 %s500, %s495
        %s502 = smax.f32 %s501, 0.0
        %s503 = smax.f32 %s495, 1.0
        %v504 = vmul.f32 %v443, %v260
        %v505 = vmul.f32 %v445, %v261
        %v506 = vmul.f32 %v447, %v262
        %v507 = vmul.f32 %v449, %v263
        %v508 = vmul.f32 %v451, %v264
        %v509 = vmul.f32 %v453, %v265
        %v510 = vmul.f32 %v455, %v266
        %v511 = vmul.f32 %v457, %v267
        %v512 = vsel %vm471, %v504, 0.0
        %v513 = vsel %vm471, %v505, 0.0
        %v514 = vadd.f32 %v512, %v513
        %v515 = vsel %vm471, %v506, 0.0
        %v516 = vadd.f32 %v514, %v515
        %v517 = vsel %vm471, %v507, 0.0
        %v518 = vadd.f32 %v516, %v517
        %v519 = vsel %vm471, %v508, 0.0
        %v520 = vadd.f32 %v518, %v519
        %v521 = vsel %vm471, %v509, 0.0
        %v522 = vadd.f32 %v520, %v521
        %v523 = vsel %vm471, %v510, 0.0
        %v524 = vadd.f32 %v522, %v523
        %v525 = vsel %vm471, %v511, 0.0
        %v526 = vadd.f32 %v524, %v525
        %527 = vadd.xlane.f32.xlu0 %v526
        %v528 = vpop.xlane.xlu0 %527
        %v529 = vrot.slane %v528, 4
        %v530 = vadd.f32 %v528, %v529
        %v531 = vrot.slane %v530, 2
        %v532 = vadd.f32 %v530, %v531
        %v533 = vrot.slane %v532, 1
        %v534 = vadd.f32 %v532, %v533
        %s535 = vtos %v534
        %v536 = vstv %s503
        %v537 = vrcp.pop %v536
        %s538 = vtos %v537
        %s539 = smul.f32 %s535, %s538
        %v540 = vmul.f32 %v470, %v270
        %vm541 = vcmask 1040384
        %v542 = vsel %vm541, %v540, 0.0
        %543 = vadd.xlane.f32.xlu0 %v542
        %v544 = vpop.xlane.xlu0 %543
        %v545 = vrot.slane %v544, 4
        %v546 = vadd.f32 %v544, %v545
        %v547 = vrot.slane %v546, 2
        %v548 = vadd.f32 %v546, %v547
        %v549 = vrot.slane %v548, 1
        %v550 = vadd.f32 %v548, %v549
        %s551 = vtos %v550
        %v552 = vstv %s503
        %v553 = vrcp.pop %v552
        %s554 = vtos %v553
        %s555 = smul.f32 %s551, %s554
        %v556 = vsub.f32 %v243, %v225
        %v557 = vsub.f32 %v244, %v226
        %v558 = vsub.f32 %v245, %v227
        %v559 = vsub.f32 %v246, %v228
        %v560 = vsub.f32 %v247, %v229
        %v561 = vsub.f32 %v248, %v230
        %v562 = vsub.f32 %v249, %v231
        %v563 = vsub.f32 %v250, %v232
        %v564 = vmul.f32 %v426, 2.0
        %v565 = vmul.f32 %v427, 2.0
        %v566 = vmul.f32 %v428, 2.0
        %v567 = vmul.f32 %v429, 2.0
        %v568 = vmul.f32 %v430, 2.0
        %v569 = vmul.f32 %v431, 2.0
        %v570 = vmul.f32 %v432, 2.0
        %v571 = vmul.f32 %v433, 2.0
        %v572 = vsub.f32 %v564, %v434
        %v573 = vsub.f32 %v565, %v435
        %v574 = vsub.f32 %v566, %v436
        %v575 = vsub.f32 %v567, %v437
        %v576 = vsub.f32 %v568, %v438
        %v577 = vsub.f32 %v569, %v439
        %v578 = vsub.f32 %v570, %v440
        %v579 = vsub.f32 %v571, %v441
        %v580 = vmul.f32 %v556, 4.0
        %v581 = vmul.f32 %v557, 4.0
        %v582 = vmul.f32 %v558, 4.0
        %v583 = vmul.f32 %v559, 4.0
        %v584 = vmul.f32 %v560, 4.0
        %v585 = vmul.f32 %v561, 4.0
        %v586 = vmul.f32 %v562, 4.0
        %v587 = vmul.f32 %v563, 4.0
        %v588 = vadd.f32 %v572, %v580
        %v589 = vadd.f32 %v573, %v581
        %v590 = vadd.f32 %v574, %v582
        %v591 = vadd.f32 %v575, %v583
        %v592 = vadd.f32 %v576, %v584
        %v593 = vadd.f32 %v577, %v585
        %v594 = vadd.f32 %v578, %v586
        %v595 = vadd.f32 %v579, %v587
        %v596 = vcvt.f32.s32.to.zero.pseudo %v588
        %v597 = vcvt.f32.s32.to.zero.pseudo %v589
        %v598 = vcvt.f32.s32.to.zero.pseudo %v590
        %v599 = vcvt.f32.s32.to.zero.pseudo %v591
        %v600 = vcvt.f32.s32.to.zero.pseudo %v592
        %v601 = vcvt.f32.s32.to.zero.pseudo %v593
        %v602 = vcvt.f32.s32.to.zero.pseudo %v594
        %v603 = vcvt.f32.s32.to.zero.pseudo %v595
        %v604 = vpack.c.b16 %v597, %v596
        %v605 = vpack.c.b16 %v599, %v598
        %v606 = vpack.c.b8 %v605, %v604
        %v607 = vpack.c.b16 %v601, %v600
        %v608 = vpack.c.b16 %v603, %v602
        %v609 = vpack.c.b8 %v608, %v607
        %610 = vst [vmem:[%s207] sm:$0xff] %v606
        %611 = vst [vmem:[%s207 + $0x8] sm:$0xff] %v609
        %vm612 = vcmp.eq.s32.totalorder %v252, 0
        %vm613 = vcmp.eq.s32.totalorder %v252, 1
        %vm614 = vcmp.eq.s32.totalorder %v252, 2
        %vm615 = vcmp.eq.s32.totalorder %v252, 3
        %vm616 = vcmp.eq.s32.totalorder %v252, 4
        %vm617 = vcmp.eq.s32.totalorder %v252, 5
        %vm618 = vcmp.eq.s32.totalorder %v252, 6
        %v619 = vstv %s539
        %v620 = vstv %s555
        %v621 = vsel %vm618, %v619, %v620
        %v622 = vstv %s502
        %v623 = vsel %vm617, %v622, %v621
        %v624 = vstv %s495
        %v625 = vsel %vm616, %v624, %v623
        %v626 = vstv %s351
        %v627 = vsel %vm615, %v626, %v625
        %v628 = vstv %s360
        %v629 = vsel %vm614, %v628, %v627
        %v630 = vstv %s329
        %v631 = vsel %vm613, %v630, %v629
        %v632 = vstv %s356
        %v633 = vsel %vm612, %v632, %v631
        %634 = vst [vmem:[%s214] sm:$0xff] %v633
        %s635 = sand.u32 %s80, 1
        %s636 = scalar_lea.sflag [#allocation4], %s635
        %s637 = sand.u32 %s80, 1
        %s638 = smul.addr %s637, 16
        %s639 = scalar_lea.vmem [#allocation7], %s638
        %s640 = sand.u32 %s106, 1
        %s641 = scalar_lea.sflag [#allocation9], %s640
        %s642 = sand.u32 %s106, 1
        %s643 = smul.addr %s642, 8
        %s644 = scalar_lea.vmem [#allocation8], %s643
        // Predicated region
        $region37: #{tpu_custom_call.1} parent=27 // pred_check
          %p645 = pneg %p90
        $region38: #{tpu_custom_call.1} parent=27 // pred_check_branch
          %647 = sbr.rel (%p645) target = $region40
        $region39: #{tpu_custom_call.1} parent=27 // pred_region
          %s649 = ssub.s32 256, 256
          %650 = vsyncadd %s636, %s649
          %s651 = smul.addr %s25, 2
          %s652 = smul.addr %s651, 128
          %s653 = scalar_lea.hbm %s2, %s652
          %s654 = sshll.u32 %s639, 4
          %s655 = int_to_ptr.vmem [resolvable:$true] %s654
          %660 = dma.vmem_to_hbm [thread:$0]  %s655, 256, %s653, %s636, 128, 128, 8
        $region40: #{tpu_custom_call.1} parent=27 // pred_fallthru
          _
        // Predicated region
        $region41: #{tpu_custom_call.1} parent=27 // pred_check
          %p661 = pneg %p116
        $region42: #{tpu_custom_call.1} parent=27 // pred_check_branch
          %663 = sbr.rel (%p661) target = $region44
        $region43: #{tpu_custom_call.1} parent=27 // pred_region
          %s665 = ssub.s32 128, 128
          %666 = vsyncadd %s641, %s665
          %s667 = smul.addr %s25, 128
          %s668 = scalar_lea.hbm %s3, %s667
          %s670 = sshll.u32 %s644, 4
          %s671 = int_to_ptr.vmem [resolvable:$true] %s670
          %673 = dma.vmem_to_hbm [thread:$0]  %s671, 128, %s668, %s641
        $region44: #{tpu_custom_call.1} parent=27 // pred_fallthru
          _
      $region28: #{tpu_custom_call.1} parent=5 // pred_fallthru
        _
      %p674 = scmp.le.s32.totalorder 2, %s20
      // Predicated region
      $region45: #{tpu_custom_call.1} parent=5 // pred_check
        %p675 = pneg %p674
      $region46: #{tpu_custom_call.1} parent=5 // pred_check_branch
        %677 = sbr.rel (%p675) target = $region48
      $region47: #{tpu_custom_call.1} parent=5 // pred_region
        %s678 = ssub.s32 %s20, 2
        // Predicated region
        $region49: #{tpu_custom_call.1} parent=47 // pred_check
          %p679 = pneg %p96
        $region50: #{tpu_custom_call.1} parent=47 // pred_check_branch
          %681 = sbr.rel (%p679) target = $region52
        $region51: #{tpu_custom_call.1} parent=47 // pred_region
          %s682 = sand.u32 %s81, 1
          %s683 = scalar_lea.sflag [#allocation4], %s682
          %s684 = sand.u32 %s81, 1
          %s685 = smul.addr %s684, 16
          %s686 = scalar_lea.vmem [#allocation7], %s685
          %687 = dma.done %s683, 256
        $region52: #{tpu_custom_call.1} parent=47 // pred_fallthru
          _
        // Predicated region
        $region53: #{tpu_custom_call.1} parent=47 // pred_check
          %p688 = pneg %p122
        $region54: #{tpu_custom_call.1} parent=47 // pred_check_branch
          %690 = sbr.rel (%p688) target = $region56
        $region55: #{tpu_custom_call.1} parent=47 // pred_region
          %s691 = sand.u32 %s107, 1
          %s692 = scalar_lea.sflag [#allocation9], %s691
          %s693 = sand.u32 %s107, 1
          %s694 = smul.addr %s693, 8
          %s695 = scalar_lea.vmem [#allocation8], %s694
          %696 = dma.done %s692, 128
        $region56: #{tpu_custom_call.1} parent=47 // pred_fallthru
          _
      $region48: #{tpu_custom_call.1} parent=5 // pred_fallthru
        _
    $region6: #{tpu_custom_call.1} parent=1 // loop_footer
      %s24 = sadd.s32 1, %s20
    $region7: #{tpu_custom_call.1} parent=1 // loop_footer_branch
      %19 = sbr.rel target = $region3
    $region8: #{tpu_custom_call.1} parent=1 // loop_exit
      _
    %697 = vsyncpa [#allocation3], 1
    %s698 = scalar_lea.sflag [#allocation3], 1
    %699 = vsyncpa %s698, 1
    %700 = vsyncpa [#allocation6], 1
    %701 = vsyncpa [#allocation4], 1
    %s702 = scalar_lea.sflag [#allocation4], 1
    %703 = vsyncpa %s702, 1
    %704 = vsyncpa [#allocation9], 1
    %s705 = scalar_lea.sflag [#allocation9], 1
    %706 = vsyncpa %s705, 1

</llo_original>
